<compile_context>
chip_gen: v6e
topology: v6e:2x2x1
jax: 0.10.0
libtpu: 0.0.40
codegen_flags: <defaults>
</compile_context>

<pallas_src>
import math

import jax
import jax.numpy as jnp
from jax.experimental import pallas as pl
from jax.experimental.pallas import tpu as pltpu


def _make_rank1_conv_kernel(KH, KW, stride, Wout):
    """Kernel for one (n, ho) output row: accumulate KH*KW tap matmuls."""

    def kernel(*refs):
        x_rows = refs[:KH]      # KH refs, each (Wp, Cin) bf16: padded row ho*stride+kh
        w_ref = refs[KH]        # (KH*KW, Cin, Cp) bf16 fused weight (s, r folded in)
        b_ref = refs[KH + 1]    # (1, Cp) f32 bias
        o_ref = refs[KH + 2]    # (Wout, Cp) output row tile

        cp = o_ref.shape[-1]
        acc = jnp.zeros((Wout, cp), jnp.float32)
        # Taps are static Python constants -> fully unrolled, all slicing static.
        for kh in range(KH):
            for kw in range(KW):
                if stride == 1:
                    xt = x_rows[kh][pl.ds(kw, Wout), :]                   # (Wout, Cin)
                else:
                    xt = x_rows[kh][pl.ds(kw, Wout, stride=stride), :]    # strided cols
                acc = acc + jnp.dot(xt, w_ref[kh * KW + kw],
                                    preferred_element_type=jnp.float32)   # MXU
        o_ref[...] = (acc + b_ref[...]).astype(o_ref.dtype)               # f32 epilogue

    return kernel


def rank1_conv2d(x, weight, s, r, bias, *, stride=1, padding=0,
                 out_dtype=jnp.bfloat16, data_format="NCHW"):
    """x: (N, Cin, H, W); weight: (Cout, Cin, KH, KW); s: (Cin,); r: (Cout,);
    bias: (Cout,).  Returns NCHW (or NHWC if data_format == "NHWC")."""
    N, Cin, H, W = x.shape
    Cout, _, KH, KW = weight.shape
    Hout = (H + 2 * padding - KH) // stride + 1
    Wout = (W + 2 * padding - KW) // stride + 1
    Hp, Wp = H + 2 * padding, W + 2 * padding

    # ---- activation: NHWC, cast to bf16 BEFORE padding; padded once. No slab.
    xn = jnp.transpose(x, (0, 2, 3, 1)).astype(jnp.bfloat16)          # (N,H,W,Cin)
    xp = jnp.pad(xn, ((0, 0), (padding, padding), (padding, padding), (0, 0)))

    # ---- fold s (input-channel) and r (output-channel) scales into the weight
    # (fold done in f32; only the final operand is bf16).
    w_fused = weight * s[None, :, None, None] * r[:, None, None, None]
    # per-tap layout (KH*KW, Cin, Cout); tap index = kh*KW + kw (matches kernel).
    w_taps = jnp.transpose(w_fused, (2, 3, 1, 0)).reshape(KH * KW, Cin, Cout)

    # ---- lane-dense Cout: zero-pad to a multiple of 128 (unmasked vst).
    Cp = ((Cout + 127) // 128) * 128
    w_taps = jnp.pad(w_taps, ((0, 0), (0, 0), (0, Cp - Cout))).astype(jnp.bfloat16)
    bp = jnp.pad(bias, (0, Cp - Cout)).reshape(1, Cp).astype(jnp.float32)

    # ---- VMEM budget derived from block sizes (+ margin, floor, cap) so it is
    # valid under v7x's 64 MiB as well as v5e/v6e's 128 MiB.
    out_itemsize = jnp.dtype(out_dtype).itemsize
    vmem_need = (2 * KH * Wp * Cin * 2            # double-buffered input row blocks
                 + KH * KW * Cin * Cp * 2         # resident fused weight (1 buffer)
                 + Cp * 4                         # bias
                 + 2 * Wout * Cp * out_itemsize)  # double-buffered output block
    vmem_limit = int(min(max(2 * vmem_need + (8 << 20), 32 << 20), 48 << 20))

    # One BlockSpec per kh tap: size-1 (squeezed) N/H blocks, so the index_map
    # returns the *element* row ho*stride + kh of the padded input directly.
    x_specs = [
        pl.BlockSpec((None, None, Wp, Cin),
                     lambda n, ho, kh=kh: (n, ho * stride + kh, 0, 0))
        for kh in range(KH)
    ]
    # Constant index_map -> single buffer (no wasted double-buffering).
    w_spec = pl.BlockSpec((KH * KW, Cin, Cp), lambda n, ho: (0, 0, 0),
                          pipeline_mode=pl.Buffered(1))
    b_spec = pl.BlockSpec((1, Cp), lambda n, ho: (0, 0),
                          pipeline_mode=pl.Buffered(1))
    o_spec = pl.BlockSpec((None, None, Wout, Cp), lambda n, ho: (n, ho, 0, 0))

    kernel = _make_rank1_conv_kernel(KH, KW, stride, Wout)
    out = pl.pallas_call(
        kernel,
        out_shape=jax.ShapeDtypeStruct((N, Hout, Wout, Cp), out_dtype),
        grid_spec=pltpu.PrefetchScalarGridSpec(
            num_scalar_prefetch=0,
            grid=(N, Hout),
            in_specs=[*x_specs, w_spec, b_spec],
            out_specs=o_spec,
        ),
        compiler_params=pltpu.CompilerParams(
            dimension_semantics=("parallel", "parallel"),   # rows across TCs
            vmem_limit_bytes=vmem_limit,
        ),
    )(*([xp] * KH), w_taps, bp)

    out = out[:, :, :, :Cout]                     # drop lane padding, natural NHWC
    if data_format == "NHWC":
        return out
    return jnp.transpose(out, (0, 3, 1, 2))       # NCHW to match PyTorch


if __name__ == "__main__":
    # Small shapes consistent with the module's forward.
    N, Cin, H, W = 2, 4, 16, 16
    Cout, Ksz, pad, stride = 8, 3, 1, 1
    components = 1

    key = jax.random.PRNGKey(0)
    k_w, k_smu, k_seps, k_rmu, k_reps, k_b, k_x = jax.random.split(key, 7)

    # Conv2d.reset_parameters: kaiming_uniform(a=sqrt(5)) -> bound = 1/sqrt(fan_in)
    fan_in = Cin * Ksz * Ksz
    bound = 1.0 / math.sqrt(fan_in)
    weight = jax.random.uniform(k_w, (Cout, Cin, Ksz, Ksz), jnp.float32, -bound, bound)

    # TODO(synk): GaussianParameter is not provided in the source file; its
    # sample() is modeled as mu + sigma*eps with sign-initialized mu (sign_init).
    sigma = 0.1
    s_mu = jnp.sign(jax.random.normal(k_smu, (Cin,), jnp.float32))
    r_mu = jnp.sign(jax.random.normal(k_rmu, (Cout,), jnp.float32))
    s = s_mu + sigma * jax.random.normal(k_seps, (Cin,), jnp.float32)
    r = r_mu + sigma * jax.random.normal(k_reps, (Cout,), jnp.float32)

    bias = jax.random.uniform(k_b, (components, Cout), jnp.float32, -bound, bound)
    component_counter = 0  # components=1 -> always component 0

    x = jax.random.normal(k_x, (N, Cin, H, W), jnp.float32)

    out = rank1_conv2d(x, weight, s, r, bias[component_counter],
                       stride=stride, padding=pad)
    out = jax.block_until_ready(out)

    # Pure-JAX f32 reference of the PyTorch forward.
    ref = jax.lax.conv_general_dilated(
        x * s[None, :, None, None], weight,
        window_strides=(stride, stride),
        padding=[(pad, pad), (pad, pad)],
        dimension_numbers=("NCHW", "OIHW", "NCHW"),
    ) * r[None, :, None, None] + bias[component_counter][None, :, None, None]

    assert out.shape == (N, Cout, H, W)
    # Tolerance accounts for bf16 MXU operands + bf16 output (f32 accumulation)
    # and the fold-s/r-into-weight reassociation vs. the f32 reference.
    assert jnp.allclose(out.astype(jnp.float32), ref, atol=5e-2, rtol=5e-2), \
        float(jnp.max(jnp.abs(out.astype(jnp.float32) - ref)))
    print("KERNEL_OK")
</pallas_src>

<mosaic_0001>
module attributes {stable_mosaic.version = 11 : i64} {
  func.func @kernel(%arg0: i32, %arg1: i32, %arg2: memref<1x1x18x4xbf16, #tpu.memory_space<vmem>>, %arg3: memref<1x1x18x4xbf16, #tpu.memory_space<vmem>>, %arg4: memref<1x1x18x4xbf16, #tpu.memory_space<vmem>>, %arg5: memref<9x4x128xbf16, #tpu.memory_space<vmem>>, %arg6: memref<1x128xf32, #tpu.memory_space<vmem>>, %arg7: memref<1x1x16x128xbf16, #tpu.memory_space<vmem>>) attributes {dimension_semantics = [#tpu.dimension_semantics<parallel>, #tpu.dimension_semantics<parallel>], iteration_bounds = array<i64: 2, 16>, scalar_prefetch = 0 : i64, scratch_operands = 0 : i64, tpu.core_type = #tpu.core_type<tc>, window_params = [{transform_indices = @transform_0, window_bounds = array<i64: 1, 1, 18, 4>}, {transform_indices = @transform_1, window_bounds = array<i64: 1, 1, 18, 4>}, {transform_indices = @transform_2, window_bounds = array<i64: 1, 1, 18, 4>}, {pipeline_mode = #tpu.pipeline_mode<synchronous>, transform_indices = @transform_3, window_bounds = array<i64: 9, 4, 128>}, {pipeline_mode = #tpu.pipeline_mode<synchronous>, transform_indices = @transform_4, window_bounds = array<i64: 1, 128>}, {transform_indices = @transform_5, window_bounds = array<i64: 1, 1, 16, 128>}]} {
    %cst = arith.constant 0.000000e+00 : f32
    %0 = vector.broadcast %cst : f32 to vector<16x128xf32>
    %c0 = arith.constant 0 : index
    %c0_0 = arith.constant 0 : index
    %c0_1 = arith.constant 0 : index
    %c0_2 = arith.constant 0 : index
    %1 = vector.load %arg2[%c0, %c0_0, %c0_1, %c0_2] : memref<1x1x18x4xbf16, #tpu.memory_space<vmem>>, vector<1x1x16x4xbf16>
    %2 = vector.shape_cast %1 : vector<1x1x16x4xbf16> to vector<16x4xbf16>
    %c0_3 = arith.constant 0 : index
    %c0_4 = arith.constant 0 : index
    %c0_5 = arith.constant 0 : index
    %3 = vector.load %arg5[%c0_3, %c0_4, %c0_5] : memref<9x4x128xbf16, #tpu.memory_space<vmem>>, vector<1x4x128xbf16>
    %4 = vector.shape_cast %3 : vector<1x4x128xbf16> to vector<4x128xbf16>
    %cst_6 = arith.constant dense<0.000000e+00> : vector<16x128xf32>
    %5 = tpu.matmul %2, %4, %cst_6 {dimension_numbers = #tpu.dot_dimension_numbers<[1], [0], [0], [1], [0, 0, 1, 1], [], []>} : vector<16x4xbf16>, vector<4x128xbf16>, vector<16x128xf32> -> vector<16x128xf32>
    %6 = arith.addf %0, %5 : vector<16x128xf32>
    %c0_7 = arith.constant 0 : index
    %c0_8 = arith.constant 0 : index
    %c1 = arith.constant 1 : index
    %c0_9 = arith.constant 0 : index
    %7 = vector.load %arg2[%c0_7, %c0_8, %c1, %c0_9] : memref<1x1x18x4xbf16, #tpu.memory_space<vmem>>, vector<1x1x16x4xbf16>
    %8 = vector.shape_cast %7 : vector<1x1x16x4xbf16> to vector<16x4xbf16>
    %c1_10 = arith.constant 1 : index
    %c0_11 = arith.constant 0 : index
    %c0_12 = arith.constant 0 : index
    %9 = vector.load %arg5[%c1_10, %c0_11, %c0_12] : memref<9x4x128xbf16, #tpu.memory_space<vmem>>, vector<1x4x128xbf16>
    %10 = vector.shape_cast %9 : vector<1x4x128xbf16> to vector<4x128xbf16>
    %cst_13 = arith.constant dense<0.000000e+00> : vector<16x128xf32>
    %11 = tpu.matmul %8, %10, %cst_13 {dimension_numbers = #tpu.dot_dimension_numbers<[1], [0], [0], [1], [0, 0, 1, 1], [], []>} : vector<16x4xbf16>, vector<4x128xbf16>, vector<16x128xf32> -> vector<16x128xf32>
    %12 = arith.addf %6, %11 : vector<16x128xf32>
    %c0_14 = arith.constant 0 : index
    %c0_15 = arith.constant 0 : index
    %c2 = arith.constant 2 : index
    %c0_16 = arith.constant 0 : index
    %13 = vector.load %arg2[%c0_14, %c0_15, %c2, %c0_16] : memref<1x1x18x4xbf16, #tpu.memory_space<vmem>>, vector<1x1x16x4xbf16>
    %14 = vector.shape_cast %13 : vector<1x1x16x4xbf16> to vector<16x4xbf16>
    %c2_17 = arith.constant 2 : index
    %c0_18 = arith.constant 0 : index
    %c0_19 = arith.constant 0 : index
    %15 = vector.load %arg5[%c2_17, %c0_18, %c0_19] : memref<9x4x128xbf16, #tpu.memory_space<vmem>>, vector<1x4x128xbf16>
    %16 = vector.shape_cast %15 : vector<1x4x128xbf16> to vector<4x128xbf16>
    %cst_20 = arith.constant dense<0.000000e+00> : vector<16x128xf32>
    %17 = tpu.matmul %14, %16, %cst_20 {dimension_numbers = #tpu.dot_dimension_numbers<[1], [0], [0], [1], [0, 0, 1, 1], [], []>} : vector<16x4xbf16>, vector<4x128xbf16>, vector<16x128xf32> -> vector<16x128xf32>
    %18 = arith.addf %12, %17 : vector<16x128xf32>
    %c0_21 = arith.constant 0 : index
    %c0_22 = arith.constant 0 : index
    %c0_23 = arith.constant 0 : index
    %c0_24 = arith.constant 0 : index
    %19 = vector.load %arg3[%c0_21, %c0_22, %c0_23, %c0_24] : memref<1x1x18x4xbf16, #tpu.memory_space<vmem>>, vector<1x1x16x4xbf16>
    %20 = vector.shape_cast %19 : vector<1x1x16x4xbf16> to vector<16x4xbf16>
    %c3 = arith.constant 3 : index
    %c0_25 = arith.constant 0 : index
    %c0_26 = arith.constant 0 : index
    %21 = vector.load %arg5[%c3, %c0_25, %c0_26] : memref<9x4x128xbf16, #tpu.memory_space<vmem>>, vector<1x4x128xbf16>
    %22 = vector.shape_cast %21 : vector<1x4x128xbf16> to vector<4x128xbf16>
    %cst_27 = arith.constant dense<0.000000e+00> : vector<16x128xf32>
    %23 = tpu.matmul %20, %22, %cst_27 {dimension_numbers = #tpu.dot_dimension_numbers<[1], [0], [0], [1], [0, 0, 1, 1], [], []>} : vector<16x4xbf16>, vector<4x128xbf16>, vector<16x128xf32> -> vector<16x128xf32>
    %24 = arith.addf %18, %23 : vector<16x128xf32>
    %c0_28 = arith.constant 0 : index
    %c0_29 = arith.constant 0 : index
    %c1_30 = arith.constant 1 : index
    %c0_31 = arith.constant 0 : index
    %25 = vector.load %arg3[%c0_28, %c0_29, %c1_30, %c0_31] : memref<1x1x18x4xbf16, #tpu.memory_space<vmem>>, vector<1x1x16x4xbf16>
    %26 = vector.shape_cast %25 : vector<1x1x16x4xbf16> to vector<16x4xbf16>
    %c4 = arith.constant 4 : index
    %c0_32 = arith.constant 0 : index
    %c0_33 = arith.constant 0 : index
    %27 = vector.load %arg5[%c4, %c0_32, %c0_33] : memref<9x4x128xbf16, #tpu.memory_space<vmem>>, vector<1x4x128xbf16>
    %28 = vector.shape_cast %27 : vector<1x4x128xbf16> to vector<4x128xbf16>
    %cst_34 = arith.constant dense<0.000000e+00> : vector<16x128xf32>
    %29 = tpu.matmul %26, %28, %cst_34 {dimension_numbers = #tpu.dot_dimension_numbers<[1], [0], [0], [1], [0, 0, 1, 1], [], []>} : vector<16x4xbf16>, vector<4x128xbf16>, vector<16x128xf32> -> vector<16x128xf32>
    %30 = arith.addf %24, %29 : vector<16x128xf32>
    %c0_35 = arith.constant 0 : index
    %c0_36 = arith.constant 0 : index
    %c2_37 = arith.constant 2 : index
    %c0_38 = arith.constant 0 : index
    %31 = vector.load %arg3[%c0_35, %c0_36, %c2_37, %c0_38] : memref<1x1x18x4xbf16, #tpu.memory_space<vmem>>, vector<1x1x16x4xbf16>
    %32 = vector.shape_cast %31 : vector<1x1x16x4xbf16> to vector<16x4xbf16>
    %c5 = arith.constant 5 : index
    %c0_39 = arith.constant 0 : index
    %c0_40 = arith.constant 0 : index
    %33 = vector.load %arg5[%c5, %c0_39, %c0_40] : memref<9x4x128xbf16, #tpu.memory_space<vmem>>, vector<1x4x128xbf16>
    %34 = vector.shape_cast %33 : vector<1x4x128xbf16> to vector<4x128xbf16>
    %cst_41 = arith.constant dense<0.000000e+00> : vector<16x128xf32>
    %35 = tpu.matmul %32, %34, %cst_41 {dimension_numbers = #tpu.dot_dimension_numbers<[1], [0], [0], [1], [0, 0, 1, 1], [], []>} : vector<16x4xbf16>, vector<4x128xbf16>, vector<16x128xf32> -> vector<16x128xf32>
    %36 = arith.addf %30, %35 : vector<16x128xf32>
    %c0_42 = arith.constant 0 : index
    %c0_43 = arith.constant 0 : index
    %c0_44 = arith.constant 0 : index
    %c0_45 = arith.constant 0 : index
    %37 = vector.load %arg4[%c0_42, %c0_43, %c0_44, %c0_45] : memref<1x1x18x4xbf16, #tpu.memory_space<vmem>>, vector<1x1x16x4xbf16>
    %38 = vector.shape_cast %37 : vector<1x1x16x4xbf16> to vector<16x4xbf16>
    %c6 = arith.constant 6 : index
    %c0_46 = arith.constant 0 : index
    %c0_47 = arith.constant 0 : index
    %39 = vector.load %arg5[%c6, %c0_46, %c0_47] : memref<9x4x128xbf16, #tpu.memory_space<vmem>>, vector<1x4x128xbf16>
    %40 = vector.shape_cast %39 : vector<1x4x128xbf16> to vector<4x128xbf16>
    %cst_48 = arith.constant dense<0.000000e+00> : vector<16x128xf32>
    %41 = tpu.matmul %38, %40, %cst_48 {dimension_numbers = #tpu.dot_dimension_numbers<[1], [0], [0], [1], [0, 0, 1, 1], [], []>} : vector<16x4xbf16>, vector<4x128xbf16>, vector<16x128xf32> -> vector<16x128xf32>
    %42 = arith.addf %36, %41 : vector<16x128xf32>
    %c0_49 = arith.constant 0 : index
    %c0_50 = arith.constant 0 : index
    %c1_51 = arith.constant 1 : index
    %c0_52 = arith.constant 0 : index
    %43 = vector.load %arg4[%c0_49, %c0_50, %c1_51, %c0_52] : memref<1x1x18x4xbf16, #tpu.memory_space<vmem>>, vector<1x1x16x4xbf16>
    %44 = vector.shape_cast %43 : vector<1x1x16x4xbf16> to vector<16x4xbf16>
    %c7 = arith.constant 7 : index
    %c0_53 = arith.constant 0 : index
    %c0_54 = arith.constant 0 : index
    %45 = vector.load %arg5[%c7, %c0_53, %c0_54] : memref<9x4x128xbf16, #tpu.memory_space<vmem>>, vector<1x4x128xbf16>
    %46 = vector.shape_cast %45 : vector<1x4x128xbf16> to vector<4x128xbf16>
    %cst_55 = arith.constant dense<0.000000e+00> : vector<16x128xf32>
    %47 = tpu.matmul %44, %46, %cst_55 {dimension_numbers = #tpu.dot_dimension_numbers<[1], [0], [0], [1], [0, 0, 1, 1], [], []>} : vector<16x4xbf16>, vector<4x128xbf16>, vector<16x128xf32> -> vector<16x128xf32>
    %48 = arith.addf %42, %47 : vector<16x128xf32>
    %c0_56 = arith.constant 0 : index
    %c0_57 = arith.constant 0 : index
    %c2_58 = arith.constant 2 : index
    %c0_59 = arith.constant 0 : index
    %49 = vector.load %arg4[%c0_56, %c0_57, %c2_58, %c0_59] : memref<1x1x18x4xbf16, #tpu.memory_space<vmem>>, vector<1x1x16x4xbf16>
    %50 = vector.shape_cast %49 : vector<1x1x16x4xbf16> to vector<16x4xbf16>
    %c8 = arith.constant 8 : index
    %c0_60 = arith.constant 0 : index
    %c0_61 = arith.constant 0 : index
    %51 = vector.load %arg5[%c8, %c0_60, %c0_61] : memref<9x4x128xbf16, #tpu.memory_space<vmem>>, vector<1x4x128xbf16>
    %52 = vector.shape_cast %51 : vector<1x4x128xbf16> to vector<4x128xbf16>
    %cst_62 = arith.constant dense<0.000000e+00> : vector<16x128xf32>
    %53 = tpu.matmul %50, %52, %cst_62 {dimension_numbers = #tpu.dot_dimension_numbers<[1], [0], [0], [1], [0, 0, 1, 1], [], []>} : vector<16x4xbf16>, vector<4x128xbf16>, vector<16x128xf32> -> vector<16x128xf32>
    %54 = arith.addf %48, %53 : vector<16x128xf32>
    %c0_63 = arith.constant 0 : index
    %c0_64 = arith.constant 0 : index
    %55 = vector.load %arg6[%c0_63, %c0_64] : memref<1x128xf32, #tpu.memory_space<vmem>>, vector<1x128xf32>
    %56 = vector.broadcast %55 : vector<1x128xf32> to vector<16x128xf32>
    %57 = arith.addf %54, %56 : vector<16x128xf32>
    %58 = arith.truncf %57 : vector<16x128xf32> to vector<16x128xbf16>
    %c0_65 = arith.constant 0 : index
    %c0_66 = arith.constant 0 : index
    %c0_67 = arith.constant 0 : index
    %c0_68 = arith.constant 0 : index
    %59 = vector.load %arg7[%c0_65, %c0_66, %c0_67, %c0_68] : memref<1x1x16x128xbf16, #tpu.memory_space<vmem>>, vector<1x1x16x128xbf16>
    %60 = vector.shape_cast %59 : vector<1x1x16x128xbf16> to vector<16x128xbf16>
    %61 = vector.shape_cast %58 : vector<16x128xbf16> to vector<1x1x16x128xbf16>
    tpu.vector_store %arg7[%c0_65, %c0_66, %c0_67, %c0_68], %61 {strides = array<i32>} : memref<1x1x16x128xbf16, #tpu.memory_space<vmem>>, vector<1x1x16x128xbf16>,
    return
  }
  func.func @transform_0(%arg0: i32, %arg1: i32) -> (i32, i32, i32, i32) {
    %c1_i32 = arith.constant 1 : i32
    %0 = arith.muli %arg1, %c1_i32 : i32
    %c0_i32 = arith.constant 0 : i32
    %1 = arith.addi %0, %c0_i32 : i32
    %c0_i32_0 = arith.constant 0 : i32
    %c0_i32_1 = arith.constant 0 : i32
    %c0_i32_2 = arith.constant 0 : i32
    return %arg0, %1, %c0_i32_0, %c0_i32_1 : i32, i32, i32, i32
  }
  func.func @transform_1(%arg0: i32, %arg1: i32) -> (i32, i32, i32, i32) {
    %c1_i32 = arith.constant 1 : i32
    %0 = arith.muli %arg1, %c1_i32 : i32
    %c1_i32_0 = arith.constant 1 : i32
    %1 = arith.addi %0, %c1_i32_0 : i32
    %c0_i32 = arith.constant 0 : i32
    %c0_i32_1 = arith.constant 0 : i32
    %c0_i32_2 = arith.constant 0 : i32
    return %arg0, %1, %c0_i32, %c0_i32_1 : i32, i32, i32, i32
  }
  func.func @transform_2(%arg0: i32, %arg1: i32) -> (i32, i32, i32, i32) {
    %c1_i32 = arith.constant 1 : i32
    %0 = arith.muli %arg1, %c1_i32 : i32
    %c2_i32 = arith.constant 2 : i32
    %1 = arith.addi %0, %c2_i32 : i32
    %c0_i32 = arith.constant 0 : i32
    %c0_i32_0 = arith.constant 0 : i32
    %c0_i32_1 = arith.constant 0 : i32
    return %arg0, %1, %c0_i32, %c0_i32_0 : i32, i32, i32, i32
  }
  func.func @transform_3(%arg0: i32, %arg1: i32) -> (i32, i32, i32) {
    %c0_i32 = arith.constant 0 : i32
    %c0_i32_0 = arith.constant 0 : i32
    %c0_i32_1 = arith.constant 0 : i32
    %c0_i32_2 = arith.constant 0 : i32
    return %c0_i32, %c0_i32_0, %c0_i32_1 : i32, i32, i32
  }
  func.func @transform_4(%arg0: i32, %arg1: i32) -> (i32, i32) {
    %c0_i32 = arith.constant 0 : i32
    %c0_i32_0 = arith.constant 0 : i32
    %c0_i32_1 = arith.constant 0 : i32
    return %c0_i32, %c0_i32_0 : i32, i32
  }
  func.func @transform_5(%arg0: i32, %arg1: i32) -> (i32, i32, i32, i32) {
    %c0_i32 = arith.constant 0 : i32
    %c0_i32_0 = arith.constant 0 : i32
    %c0_i32_1 = arith.constant 0 : i32
    return %arg0, %arg1, %c0_i32, %c0_i32_0 : i32, i32, i32, i32
  }
}

</mosaic_0001>

<llo_original>
// kernel: tpu_custom_call.1
$region0: #{tpu_custom_call.1}
  #allocation0 [shape = 'u32[]', space=smem, size = 0x4, offset = 0x4, fixed_abs, tag = 'smem constant byte address 0x4 - core index']
  #allocation1 [shape = 'u32[144,128]{1,0:T(1,128)}', space=vmem, size = 0x12000, scoped, tag = 'internal scratch']
  %s0 = inlined_call_operand.vmem [shape: bf16[2,18,18,4], index: 0, kind: input, shape index: {}]
  %s1 = inlined_call_operand.vmem [shape: bf16[2,18,18,4], index: 1, kind: input, shape index: {}]
  %s2 = inlined_call_operand.vmem [shape: bf16[2,18,18,4], index: 2, kind: input, shape index: {}]
  %s3 = inlined_call_operand.vmem [shape: bf16[9,4,128], index: 3, kind: input, shape index: {}]
  %s4 = inlined_call_operand.vmem [shape: f32[1,128], index: 4, kind: input, shape index: {}]
  %s5 = inlined_call_operand.hbm [shape: bf16[2,16,16,128], index: 5, kind: output, shape index: {}]
  %s6 = sld [smem:[#allocation0]]
  $region53: #{tpu_custom_call.1} parent=0
    _
  %s8 = ssub.s32 1, %s6
  %s9 = scalar_select 0, %s8, %s6
  $region1: #{tpu_custom_call.1} parent=0
    #allocation2 [shape = 'u8[8192]{0}', space=vmem, size = 0x2000, scoped, tag = 'output window, operand 0']
    #allocation3 [shape = 's32[2]{0}', space=sflag, size = 0x8, scoped, tag = 'scoped memory for tpu_custom_call.1']
    %10 = vsyncpa [#allocation3], 0
    %s11 = scalar_lea.sflag [#allocation3], 1
    %12 = vsyncpa %s11, 0
    loop: start=0, step=1, limit=34
    $region2: #{tpu_custom_call.1} parent=1 // loop_pre_header
      _
    $region3: #{tpu_custom_call.1} parent=1 // loop_header
      %s14 = sphi 0, %s18
      %p15 = scmp.ge.s32.totalorder %s14, 34
      %s21 = sphi 0, %s33
      %s22 = sphi 0, %s29
      %s23 = sphi 0, %s21
      %s24 = sphi 0, %s22
      %s25 = sphi 0, %s23
      %s26 = sphi 0, %s24
      %s38 = sphi 0, %s40
      %s41 = sphi 0, %s38
      %s42 = sphi 0, %s41
      %s58 = sphi 0, %s42
      %s68 = sphi 0, %s70
      %s71 = sphi 0, %s68
      %s72 = sphi 0, %s71
      %s88 = sphi 0, %s72
      %s98 = sphi 0, %s100
      %s101 = sphi 0, %s98
      %s102 = sphi 0, %s101
      %s118 = sphi 0, %s102
      %s122 = sphi 0, %s122
      %s124 = sphi 0, %s122
      %s125 = sphi 0, %s124
      %s139 = sphi 0, %s125
      %s143 = sphi 0, %s143
      %s145 = sphi 0, %s143
      %s146 = sphi 0, %s145
      %s160 = sphi 0, %s146
      %s168 = sphi 0, %s170
      %s171 = sphi 0, %s168
      %s172 = sphi 0, %s171
      %s188 = sphi 0, %s172
    $region4: #{tpu_custom_call.1} parent=1 // loop_header_branch
      %17 = sbr.rel (%p15) target = $region8
    $region5: #{tpu_custom_call.1} parent=1 // loop_body
      %s19 = ssub.s32 %s14, 1
      %s20 = ssub.s32 %s14, 2
      %s27 = sadd.s32 1, %s22
      %p28 = scmp.ge.s32.totalorder %s27, 16
      %s29 = scalar_select %p28, 0, %s27
      %s30 = sadd.s32 1, %s21
      %s31 = scalar_select %p28, %s30, %s21
      %p32 = scmp.ge.s32.totalorder %s31, 2
      %s33 = scalar_select %p32, 0, %s31
      %s34 = ssub.s32 %s21, %s33
      %s35 = ssub.s32 %s22, %s29
      %s36 = sor.u32 %s34, %s35
      %p37 = scmp.eq.s32.totalorder %s36, 0
      %s39 = sadd.s32 %s38, 1
      %s40 = scalar_select %p37, %s38, %s39
      %p43 = pneg %p37
      %p44 = scmp.eq.s32.totalorder %s14, 31
      %p45 = por %p43, %p44
      %p46 = scmp.ne.s32.totalorder %s38, %s41
      %p47 = scmp.eq.s32.totalorder %s14, 0
      %p48 = por %p46, %p47
      %p49 = scmp.ne.s32.totalorder %s38, %s41
      %p50 = scmp.eq.s32.totalorder %s19, 31
      %p51 = por %p49, %p50
      %p52 = scmp.ne.s32.totalorder %s41, %s42
      %p53 = scmp.eq.s32.totalorder %s19, 0
      %p54 = por %p52, %p53
      %p55 = scmp.ne.s32.totalorder %s41, %s42
      %p56 = scmp.eq.s32.totalorder %s20, 31
      %p57 = por %p55, %p56
      %p59 = scmp.ne.s32.totalorder %s42, %s58
      %p60 = scmp.eq.s32.totalorder %s20, 0
      %p61 = por %p59, %p60
      %s62 = sadd.s32 %s22, 1
      %s63 = sadd.s32 %s29, 1
      %s64 = ssub.s32 %s21, %s33
      %s65 = ssub.s32 %s62, %s63
      %s66 = sor.u32 %s64, %s65
      %p67 = scmp.eq.s32.totalorder %s66, 0
      %s69 = sadd.s32 %s68, 1
      %s70 = scalar_select %p67, %s68, %s69
      %p73 = pneg %p67
      %p74 = scmp.eq.s32.totalorder %s14, 31
      %p75 = por %p73, %p74
      %p76 = scmp.ne.s32.totalorder %s68, %s71
      %p77 = scmp.eq.s32.totalorder %s14, 0
      %p78 = por %p76, %p77
      %p79 = scmp.ne.s32.totalorder %s68, %s71
      %p80 = scmp.eq.s32.totalorder %s19, 31
      %p81 = por %p79, %p80
      %p82 = scmp.ne.s32.totalorder %s71, %s72
      %p83 = scmp.eq.s32.totalorder %s19, 0
      %p84 = por %p82, %p83
      %p85 = scmp.ne.s32.totalorder %s71, %s72
      %p86 = scmp.eq.s32.totalorder %s20, 31
      %p87 = por %p85, %p86
      %p89 = scmp.ne.s32.totalorder %s72, %s88
      %p90 = scmp.eq.s32.totalorder %s20, 0
      %p91 = por %p89, %p90
      %s92 = sadd.s32 %s22, 2
      %s93 = sadd.s32 %s29, 2
      %s94 = ssub.s32 %s21, %s33
      %s95 = ssub.s32 %s92, %s93
      %s96 = sor.u32 %s94, %s95
      %p97 = scmp.eq.s32.totalorder %s96, 0
      %s99 = sadd.s32 %s98, 1
      %s100 = scalar_select %p97, %s98, %s99
      %p103 = pneg %p97
      %p104 = scmp.eq.s32.totalorder %s14, 31
      %p105 = por %p103, %p104
      %p106 = scmp.ne.s32.totalorder %s98, %s101
      %p107 = scmp.eq.s32.totalorder %s14, 0
      %p108 = por %p106, %p107
      %p109 = scmp.ne.s32.totalorder %s98, %s101
      %p110 = scmp.eq.s32.totalorder %s19, 31
      %p111 = por %p109, %p110
      %p112 = scmp.ne.s32.totalorder %s101, %s102
      %p113 = scmp.eq.s32.totalorder %s19, 0
      %p114 = por %p112, %p113
      %p115 = scmp.ne.s32.totalorder %s101, %s102
      %p116 = scmp.eq.s32.totalorder %s20, 31
      %p117 = por %p115, %p116
      %p119 = scmp.ne.s32.totalorder %s102, %s118
      %p120 = scmp.eq.s32.totalorder %s20, 0
      %p121 = por %p119, %p120
      %s123 = sadd.s32 %s122, 1
      %p126 = scmp.eq.s32.totalorder %s14, 31
      %p127 = scmp.ne.s32.totalorder %s122, %s124
      %p128 = scmp.eq.s32.totalorder %s14, 0
      %p129 = por %p127, %p128
      %p130 = scmp.ne.s32.totalorder %s122, %s124
      %p131 = scmp.eq.s32.totalorder %s19, 31
      %p132 = por %p130, %p131
      %p133 = scmp.ne.s32.totalorder %s124, %s125
      %p134 = scmp.eq.s32.totalorder %s19, 0
      %p135 = por %p133, %p134
      %p136 = scmp.ne.s32.totalorder %s124, %s125
      %p137 = scmp.eq.s32.totalorder %s20, 31
      %p138 = por %p136, %p137
      %p140 = scmp.ne.s32.totalorder %s125, %s139
      %p141 = scmp.eq.s32.totalorder %s20, 0
      %p142 = por %p140, %p141
      %s144 = sadd.s32 %s143, 1
      %p147 = scmp.eq.s32.totalorder %s14, 31
      %p148 = scmp.ne.s32.totalorder %s143, %s145
      %p149 = scmp.eq.s32.totalorder %s14, 0
      %p150 = por %p148, %p149
      %p151 = scmp.ne.s32.totalorder %s143, %s145
      %p152 = scmp.eq.s32.totalorder %s19, 31
      %p153 = por %p151, %p152
      %p154 = scmp.ne.s32.totalorder %s145, %s146
      %p155 = scmp.eq.s32.totalorder %s19, 0
      %p156 = por %p154, %p155
      %p157 = scmp.ne.s32.totalorder %s145, %s146
      %p158 = scmp.eq.s32.totalorder %s20, 31
      %p159 = por %p157, %p158
      %p161 = scmp.ne.s32.totalorder %s146, %s160
      %p162 = scmp.eq.s32.totalorder %s20, 0
      %p163 = por %p161, %p162
      %s164 = ssub.s32 %s21, %s33
      %s165 = ssub.s32 %s22, %s29
      %s166 = sor.u32 %s164, %s165
      %p167 = scmp.eq.s32.totalorder %s166, 0
      %s169 = sadd.s32 %s168, 1
      %s170 = scalar_select %p167, %s168, %s169
      %p173 = pneg %p167
      %p174 = scmp.eq.s32.totalorder %s14, 31
      %p175 = por %p173, %p174
      %p176 = scmp.ne.s32.totalorder %s168, %s171
      %p177 = scmp.eq.s32.totalorder %s14, 0
      %p178 = por %p176, %p177
      %p179 = scmp.ne.s32.totalorder %s168, %s171
      %p180 = scmp.eq.s32.totalorder %s19, 31
      %p181 = por %p179, %p180
      %p182 = scmp.ne.s32.totalorder %s171, %s172
      %p183 = scmp.eq.s32.totalorder %s19, 0
      %p184 = por %p182, %p183
      %p185 = scmp.ne.s32.totalorder %s171, %s172
      %p186 = scmp.eq.s32.totalorder %s20, 31
      %p187 = por %p185, %p186
      %p189 = scmp.ne.s32.totalorder %s172, %s188
      %p190 = scmp.eq.s32.totalorder %s20, 0
      %p191 = por %p189, %p190
      %p192 = scmp.le.s32.totalorder 1, %s14
      %p193 = scmp.lt.s32.totalorder %s14, 33
      %p194 = pnand %p192, %p193
      %p195 = pneg %p194
      // Predicated region
      $region9: #{tpu_custom_call.1} parent=5 // pred_check
        _
      $region10: #{tpu_custom_call.1} parent=5 // pred_check_branch
        %197 = sbr.rel (%p194) target = $region12
      $region11: #{tpu_custom_call.1} parent=5 // pred_region
        %s198 = ssub.s32 %s14, 1
        // Predicated region
        $region13: #{tpu_custom_call.1} parent=11 // pred_check
          %p199 = pneg %p135
        $region14: #{tpu_custom_call.1} parent=11 // pred_check_branch
          %201 = sbr.rel (%p199) target = $region16
        $region15: #{tpu_custom_call.1} parent=11 // pred_region
          _
        $region16: #{tpu_custom_call.1} parent=11 // pred_fallthru
          _
        // Predicated region
        $region17: #{tpu_custom_call.1} parent=11 // pred_check
          %p202 = pneg %p156
        $region18: #{tpu_custom_call.1} parent=11 // pred_check_branch
          %204 = sbr.rel (%p202) target = $region20
        $region19: #{tpu_custom_call.1} parent=11 // pred_region
          _
        $region20: #{tpu_custom_call.1} parent=11 // pred_fallthru
          _
      $region12: #{tpu_custom_call.1} parent=5 // pred_fallthru
        _
      %p205 = scmp.lt.s32.totalorder %s14, 32
      // Predicated region
      $region21: #{tpu_custom_call.1} parent=5 // pred_check
        %p206 = pneg %p205
      $region22: #{tpu_custom_call.1} parent=5 // pred_check_branch
        %208 = sbr.rel (%p206) target = $region24
      $region23: #{tpu_custom_call.1} parent=5 // pred_region
        // Predicated region
        $region25: #{tpu_custom_call.1} parent=23 // pred_check
          %p209 = pneg %p48
        $region26: #{tpu_custom_call.1} parent=23 // pred_check_branch
          %211 = sbr.rel (%p209) target = $region28
        $region27: #{tpu_custom_call.1} parent=23 // pred_region
          %p212 = scmp.lt.s32.totalorder %s21, 1
          %s213 = scalar_select %p212, %s21, 1
          %p214 = scmp.lt.s32.totalorder %s22, 17
          %s215 = scalar_select %p214, %s22, 17
          %s216 = smul.addr %s215, 3
          %s217 = smul.addr %s213, 54
          %s218 = sadd.s32 %s216, %s217
          %s219 = smul.addr %s218, 4
          %s220 = scalar_lea.vmem %s0, %s219
        $region28: #{tpu_custom_call.1} parent=23 // pred_fallthru
          _
        // Predicated region
        $region29: #{tpu_custom_call.1} parent=23 // pred_check
          %p221 = pneg %p78
        $region30: #{tpu_custom_call.1} parent=23 // pred_check_branch
          %223 = sbr.rel (%p221) target = $region32
        $region31: #{tpu_custom_call.1} parent=23 // pred_region
          %s224 = sadd.s32 %s22, 1
          %p225 = scmp.lt.s32.totalorder %s21, 1
          %s226 = scalar_select %p225, %s21, 1
          %p227 = scmp.lt.s32.totalorder %s224, 17
          %s228 = scalar_select %p227, %s224, 17
          %s229 = smul.addr %s228, 3
          %s230 = smul.addr %s226, 54
          %s231 = sadd.s32 %s229, %s230
          %s232 = smul.addr %s231, 4
          %s233 = scalar_lea.vmem %s1, %s232
          %s234 = sadd.s32 %s22, 1
        $region32: #{tpu_custom_call.1} parent=23 // pred_fallthru
          _
        // Predicated region
        $region33: #{tpu_custom_call.1} parent=23 // pred_check
          %p235 = pneg %p108
        $region34: #{tpu_custom_call.1} parent=23 // pred_check_branch
          %237 = sbr.rel (%p235) target = $region36
        $region35: #{tpu_custom_call.1} parent=23 // pred_region
          %s238 = sadd.s32 %s22, 2
          %p239 = scmp.lt.s32.totalorder %s21, 1
          %s240 = scalar_select %p239, %s21, 1
          %p241 = scmp.lt.s32.totalorder %s238, 17
          %s242 = scalar_select %p241, %s238, 17
          %s243 = smul.addr %s242, 3
          %s244 = smul.addr %s240, 54
          %s245 = sadd.s32 %s243, %s244
          %s246 = smul.addr %s245, 4
          %s247 = scalar_lea.vmem %s2, %s246
          %s248 = sadd.s32 %s22, 2
        $region36: #{tpu_custom_call.1} parent=23 // pred_fallthru
          _
      $region24: #{tpu_custom_call.1} parent=5 // pred_fallthru
        _
      %p249 = scmp.le.s32.totalorder 1, %s14
      %p250 = scmp.lt.s32.totalorder %s14, 33
      %p251 = pnand %p249, %p250
      %p252 = pneg %p251
      // Predicated region
      $region37: #{tpu_custom_call.1} parent=5 // pred_check
        _
      $region38: #{tpu_custom_call.1} parent=5 // pred_check_branch
        %254 = sbr.rel (%p251) target = $region40
      $region39: #{tpu_custom_call.1} parent=5 // pred_region
        %s255 = ssub.s32 %s14, 1
        %p256 = scmp.lt.s32.totalorder %s23, 1
        %s257 = scalar_select %p256, %s23, 1
        %p258 = scmp.lt.s32.totalorder %s24, 17
        %s259 = scalar_select %p258, %s24, 17
        %s260 = smul.addr %s259, 3
        %s261 = smul.addr %s257, 54
        %s262 = sadd.s32 %s260, %s261
        %s263 = smul.addr %s262, 4
        %s264 = scalar_lea.vmem %s0, %s263
        %p265 = pneg %p54
        %p266 = pneg %p51
        %s267 = sadd.s32 %s24, 1
        %p268 = scmp.lt.s32.totalorder %s23, 1
        %s269 = scalar_select %p268, %s23, 1
        %p270 = scmp.lt.s32.totalorder %s267, 17
        %s271 = scalar_select %p270, %s267, 17
        %s272 = smul.addr %s271, 3
        %s273 = smul.addr %s269, 54
        %s274 = sadd.s32 %s272, %s273
        %s275 = smul.addr %s274, 4
        %s276 = scalar_lea.vmem %s1, %s275
        %p277 = pneg %p84
        %p278 = pneg %p81
        %s279 = sadd.s32 %s24, 2
        %p280 = scmp.lt.s32.totalorder %s23, 1
        %s281 = scalar_select %p280, %s23, 1
        %p282 = scmp.lt.s32.totalorder %s279, 17
        %s283 = scalar_select %p282, %s279, 17
        %s284 = smul.addr %s283, 3
        %s285 = smul.addr %s281, 54
        %s286 = sadd.s32 %s284, %s285
        %s287 = smul.addr %s286, 4
        %s288 = scalar_lea.vmem %s2, %s287
        %p289 = pneg %p114
        %p290 = pneg %p111
        %p291 = pneg %p135
        %p292 = pneg %p132
        %p293 = pneg %p156
        %p294 = pneg %p153
        %p295 = pneg %p184
        %p296 = pneg %p181
        %s297 = sand.u32 %s171, 1
        %s298 = scalar_lea.sflag [#allocation3], %s297
        %s299 = sand.u32 %s171, 1
        %s300 = smul.addr %s299, 8
        %s301 = scalar_lea.vmem [#allocation2], %s300
        %p302 = scmp.lt.s32.totalorder %s23, 1
        %s303 = scalar_select %p302, %s23, 1
        %p304 = scmp.lt.s32.totalorder %s24, 17
        %s305 = scalar_select %p304, %s24, 17
        %s306 = smul.addr %s305, 3
        %s307 = smul.addr %s303, 54
        %s308 = sadd.s32 %s306, %s307
        %s309 = smul.addr %s308, 4
        %s310 = scalar_lea.vmem %s0, %s309
        %s311 = sadd.s32 %s24, 1
        %p312 = scmp.lt.s32.totalorder %s23, 1
        %s313 = scalar_select %p312, %s23, 1
        %p314 = scmp.lt.s32.totalorder %s311, 17
        %s315 = scalar_select %p314, %s311, 17
        %s316 = smul.addr %s315, 3
        %s317 = smul.addr %s313, 54
        %s318 = sadd.s32 %s316, %s317
        %s319 = smul.addr %s318, 4
        %s320 = scalar_lea.vmem %s1, %s319
        %s321 = sadd.s32 %s24, 1
        %s322 = sadd.s32 %s24, 2
        %p323 = scmp.lt.s32.totalorder %s23, 1
        %s324 = scalar_select %p323, %s23, 1
        %p325 = scmp.lt.s32.totalorder %s322, 17
        %s326 = scalar_select %p325, %s322, 17
        %s327 = smul.addr %s326, 3
        %s328 = smul.addr %s324, 54
        %s329 = sadd.s32 %s327, %s328
        %s330 = smul.addr %s329, 4
        %s331 = scalar_lea.vmem %s2, %s330
        %s332 = sadd.s32 %s24, 2
        %v334 = vld [vmem:[%s310] sm:$0xf]
        %v335 = vld [vmem:[%s310 + $0x4] sm:$0xf]
        %v336 = vld [vmem:[%s3] sm:$0x3]
        %v337 = vld [vmem:[%s310 + $0x8] sm:$0x1]
        %s338 = scalar_lea.vmem %s3, 2
        %v339 = vld [vmem:[%s338] sm:$0x3]
        %v343 = vunpack.c.l.b16 %v334
        %v344 = vunpack.c.l.b16 %v335
        %v345 = vunpack.c.l.b16 %v337
        %v346 = vpack.c.b16 %v344, %v343
        %v347 = vpack.c.b16 %v345, %v345
        %vm348 = vsmask.f32 7424
        %v350 = vshrl.u32 %v346, 16
        %v352 = vshll.u32 %v346, 16
        %v354 = vrot.slane %v352, 1
        %v355 = vor.u32 %v350, %v354
        %v357 = vshll.u32 %v347, 16
        %v359 = vrot.slane %v357, 1
        %v360 = vsel %vm348, %v355, %v359
        %vm361 = vcmask 31744
        %v363 = vsel %vm361, %v360, 0
        %vm365 = vcmask 1041408
        %v367 = vsel %vm365, %v339, 0
        %369 = vmatprep.subr.bf16.mxu0 0
        %370 = vmatpush1.bf16.msra.mxu0 0
        %371 = vmatprep.subr.bf16.mxu0 0
        %372 = vmatpush1.bf16.msra.mxu0 0
        %373 = vmatprep.subr.bf16.mxu0 0
        %374 = vmatpush1.bf16.msra.mxu0 0
        %375 = vmatprep.subr.bf16.mxu0 0
        %376 = vmatpush1.bf16.msra.mxu0 0
        %377 = vmatprep.subr.bf16.mxu0 0
        %378 = vmatpush1.bf16.msra.mxu0 0
        %379 = vmatprep.subr.bf16.mxu0 0
        %380 = vmatpush1.bf16.msra.mxu0 0
        %381 = vmatprep.subr.bf16.mxu0 0
        %382 = vmatpush1.bf16.msra.mxu0 0
        %383 = vmatprep.subr.bf16.mxu0 0
        %384 = vmatpush1.bf16.msra.mxu0 %v367
        %385 = vmatprep.subr.bf16.mxu0 0
        %386 = vmatpush2.bf16.msra.mxu0 0
        %387 = vmatprep.subr.bf16.mxu0 0
        %388 = vmatpush2.bf16.msra.mxu0 0
        %389 = vmatprep.subr.bf16.mxu0 0
        %390 = vmatpush2.bf16.msra.mxu0 0
        %391 = vmatprep.subr.bf16.mxu0 0
        %392 = vmatpush2.bf16.msra.mxu0 0
        %393 = vmatprep.subr.bf16.mxu0 0
        %394 = vmatpush2.bf16.msra.mxu0 0
        %395 = vmatprep.subr.bf16.mxu0 0
        %396 = vmatpush2.bf16.msra.mxu0 0
        %397 = vmatprep.subr.bf16.mxu0 0
        %398 = vmatpush2.bf16.msra.mxu0 0
        %399 = vmatprep.subr.bf16.mxu0 0
        %400 = vmatpush2.bf16.msra.mxu0 0
        %401 = vmatprep.mubr.bf16.mxu0 0
        %402 = vmatmul.mubr.bf16.gmra.mxu0 %v363
        %v403 = vpop.f32.mrf.mxu0
        %v404 = vadd.f32 0.0, %v403
        %v405 = vpop.f32.mrf.mxu0
        %v406 = vpop.f32.mrf.mxu0
        %v407 = vadd.f32 0.0, %v406
        %v408 = vpop.f32.mrf.mxu0
        %409 = vdwg.mxu0
        %v410 = vsel %vm361, %v346, 0
        %v413 = vsel %vm365, %v336, 0
        %415 = vmatprep.subr.bf16.mxu0 0
        %416 = vmatpush1.bf16.msra.mxu0 0
        %417 = vmatprep.subr.bf16.mxu0 0
        %418 = vmatpush1.bf16.msra.mxu0 0
        %419 = vmatprep.subr.bf16.mxu0 0
        %420 = vmatpush1.bf16.msra.mxu0 0
        %421 = vmatprep.subr.bf16.mxu0 0
        %422 = vmatpush1.bf16.msra.mxu0 0
        %423 = vmatprep.subr.bf16.mxu0 0
        %424 = vmatpush1.bf16.msra.mxu0 0
        %425 = vmatprep.subr.bf16.mxu0 0
        %426 = vmatpush1.bf16.msra.mxu0 0
        %427 = vmatprep.subr.bf16.mxu0 0
        %428 = vmatpush1.bf16.msra.mxu0 0
        %429 = vmatprep.subr.bf16.mxu0 0
        %430 = vmatpush1.bf16.msra.mxu0 %v413
        %431 = vmatprep.subr.bf16.mxu0 0
        %432 = vmatpush2.bf16.msra.mxu0 0
        %433 = vmatprep.subr.bf16.mxu0 0
        %434 = vmatpush2.bf16.msra.mxu0 0
        %435 = vmatprep.subr.bf16.mxu0 0
        %436 = vmatpush2.bf16.msra.mxu0 0
        %437 = vmatprep.subr.bf16.mxu0 0
        %438 = vmatpush2.bf16.msra.mxu0 0
        %439 = vmatprep.subr.bf16.mxu0 0
        %440 = vmatpush2.bf16.msra.mxu0 0
        %441 = vmatprep.subr.bf16.mxu0 0
        %442 = vmatpush2.bf16.msra.mxu0 0
        %443 = vmatprep.subr.bf16.mxu0 0
        %444 = vmatpush2.bf16.msra.mxu0 0
        %445 = vmatprep.subr.bf16.mxu0 0
        %446 = vmatpush2.bf16.msra.mxu0 0
        %447 = vmatprep.mubr.bf16.mxu0 0
        %448 = vmatmul.mubr.bf16.gmra.mxu0 %v410
        %v449 = vpop.f32.mrf.mxu0
        %v450 = vadd.f32 %v404, %v449
        %v451 = vpop.f32.mrf.mxu0
        %v452 = vpop.f32.mrf.mxu0
        %v453 = vadd.f32 %v407, %v452
        %v454 = vpop.f32.mrf.mxu0
        %455 = vdwg.mxu0
        %v456 = vld [vmem:[%s310] sm:$0xe]
        %s457 = scalar_lea.vmem %s3, 4
        %v458 = vld [vmem:[%s457] sm:$0x3]
        %v460 = vunpack.c.l.b16 %v456
        %v461 = vpack.c.b16 %v344, %v460
        %vm462 = vcmask 1046528
        %v463 = vrot.slane %v461, 1
        %v464 = vrot.slane %v347, 1
        %v465 = vsel %vm462, %v463, %v464
        %v467 = vsel %vm361, %v465, 0
        %v470 = vsel %vm365, %v458, 0
        %472 = vmatprep.subr.bf16.mxu0 0
        %473 = vmatpush1.bf16.msra.mxu0 0
        %474 = vmatprep.subr.bf16.mxu0 0
        %475 = vmatpush1.bf16.msra.mxu0 0
        %476 = vmatprep.subr.bf16.mxu0 0
        %477 = vmatpush1.bf16.msra.mxu0 0
        %478 = vmatprep.subr.bf16.mxu0 0
        %479 = vmatpush1.bf16.msra.mxu0 0
        %480 = vmatprep.subr.bf16.mxu0 0
        %481 = vmatpush1.bf16.msra.mxu0 0
        %482 = vmatprep.subr.bf16.mxu0 0
        %483 = vmatpush1.bf16.msra.mxu0 0
        %484 = vmatprep.subr.bf16.mxu0 0
        %485 = vmatpush1.bf16.msra.mxu0 0
        %486 = vmatprep.subr.bf16.mxu0 0
        %487 = vmatpush1.bf16.msra.mxu0 %v470
        %488 = vmatprep.subr.bf16.mxu0 0
        %489 = vmatpush2.bf16.msra.mxu0 0
        %490 = vmatprep.subr.bf16.mxu0 0
        %491 = vmatpush2.bf16.msra.mxu0 0
        %492 = vmatprep.subr.bf16.mxu0 0
        %493 = vmatpush2.bf16.msra.mxu0 0
        %494 = vmatprep.subr.bf16.mxu0 0
        %495 = vmatpush2.bf16.msra.mxu0 0
        %496 = vmatprep.subr.bf16.mxu0 0
        %497 = vmatpush2.bf16.msra.mxu0 0
        %498 = vmatprep.subr.bf16.mxu0 0
        %499 = vmatpush2.bf16.msra.mxu0 0
        %500 = vmatprep.subr.bf16.mxu0 0
        %501 = vmatpush2.bf16.msra.mxu0 0
        %502 = vmatprep.subr.bf16.mxu0 0
        %503 = vmatpush2.bf16.msra.mxu0 0
        %504 = vmatprep.mubr.bf16.mxu0 0
        %505 = vmatmul.mubr.bf16.gmra.mxu0 %v467
        %v506 = vpop.f32.mrf.mxu0
        %v507 = vadd.f32 0.0, %v506
        %v508 = vpop.f32.mrf.mxu0
        %v509 = vpop.f32.mrf.mxu0
        %v510 = vadd.f32 0.0, %v509
        %v511 = vpop.f32.mrf.mxu0
        %512 = vdwg.mxu0
        %v513 = vadd.f32 %v450, %v507
        %v514 = vadd.f32 %v453, %v510
        %v515 = vld [vmem:[%s320] sm:$0xf]
        %v516 = vld [vmem:[%s320 + $0x4] sm:$0xf]
        %s517 = scalar_lea.vmem %s3, 6
        %v518 = vld [vmem:[%s517] sm:$0x3]
        %v521 = vunpack.c.l.b16 %v515
        %v522 = vunpack.c.l.b16 %v516
        %v523 = vpack.c.b16 %v522, %v521
        %v525 = vsel %vm361, %v523, 0
        %v528 = vsel %vm365, %v518, 0
        %530 = vmatprep.subr.bf16.mxu0 0
        %531 = vmatpush1.bf16.msra.mxu0 0
        %532 = vmatprep.subr.bf16.mxu0 0
        %533 = vmatpush1.bf16.msra.mxu0 0
        %534 = vmatprep.subr.bf16.mxu0 0
        %535 = vmatpush1.bf16.msra.mxu0 0
        %536 = vmatprep.subr.bf16.mxu0 0
        %537 = vmatpush1.bf16.msra.mxu0 0
        %538 = vmatprep.subr.bf16.mxu0 0
        %539 = vmatpush1.bf16.msra.mxu0 0
        %540 = vmatprep.subr.bf16.mxu0 0
        %541 = vmatpush1.bf16.msra.mxu0 0
        %542 = vmatprep.subr.bf16.mxu0 0
        %543 = vmatpush1.bf16.msra.mxu0 0
        %544 = vmatprep.subr.bf16.mxu0 0
        %545 = vmatpush1.bf16.msra.mxu0 %v528
        %546 = vmatprep.subr.bf16.mxu0 0
        %547 = vmatpush2.bf16.msra.mxu0 0
        %548 = vmatprep.subr.bf16.mxu0 0
        %549 = vmatpush2.bf16.msra.mxu0 0
        %550 = vmatprep.subr.bf16.mxu0 0
        %551 = vmatpush2.bf16.msra.mxu0 0
        %552 = vmatprep.subr.bf16.mxu0 0
        %553 = vmatpush2.bf16.msra.mxu0 0
        %554 = vmatprep.subr.bf16.mxu0 0
        %555 = vmatpush2.bf16.msra.mxu0 0
        %556 = vmatprep.subr.bf16.mxu0 0
        %557 = vmatpush2.bf16.msra.mxu0 0
        %558 = vmatprep.subr.bf16.mxu0 0
        %559 = vmatpush2.bf16.msra.mxu0 0
        %560 = vmatprep.subr.bf16.mxu0 0
        %561 = vmatpush2.bf16.msra.mxu0 0
        %562 = vmatprep.mubr.bf16.mxu0 0
        %563 = vmatmul.mubr.bf16.gmra.mxu0 %v525
        %v564 = vpop.f32.mrf.mxu0
        %v565 = vadd.f32 0.0, %v564
        %v566 = vpop.f32.mrf.mxu0
        %v567 = vpop.f32.mrf.mxu0
        %v568 = vadd.f32 0.0, %v567
        %v569 = vpop.f32.mrf.mxu0
        %570 = vdwg.mxu0
        %v571 = vadd.f32 %v513, %v565
        %v572 = vadd.f32 %v514, %v568
        %v573 = vld [vmem:[%s320] sm:$0xf]
        %v574 = vld [vmem:[%s320 + $0x4] sm:$0xf]
        %v575 = vld [vmem:[%s320 + $0x8] sm:$0x1]
        %s576 = scalar_lea.vmem %s3, 8
        %v577 = vld [vmem:[%s576] sm:$0x3]
        %v581 = vunpack.c.l.b16 %v573
        %v582 = vunpack.c.l.b16 %v574
        %v583 = vunpack.c.l.b16 %v575
        %v584 = vpack.c.b16 %v582, %v581
        %v585 = vpack.c.b16 %v583, %v583
        %v587 = vshrl.u32 %v584, 16
        %v589 = vshll.u32 %v584, 16
        %v591 = vrot.slane %v589, 1
        %v592 = vor.u32 %v587, %v591
        %v594 = vshll.u32 %v585, 16
        %v596 = vrot.slane %v594, 1
        %v597 = vsel %vm348, %v592, %v596
        %v599 = vsel %vm361, %v597, 0
        %v602 = vsel %vm365, %v577, 0
        %604 = vmatprep.subr.bf16.mxu0 0
        %605 = vmatpush1.bf16.msra.mxu0 0
        %606 = vmatprep.subr.bf16.mxu0 0
        %607 = vmatpush1.bf16.msra.mxu0 0
        %608 = vmatprep.subr.bf16.mxu0 0
        %609 = vmatpush1.bf16.msra.mxu0 0
        %610 = vmatprep.subr.bf16.mxu0 0
        %611 = vmatpush1.bf16.msra.mxu0 0
        %612 = vmatprep.subr.bf16.mxu0 0
        %613 = vmatpush1.bf16.msra.mxu0 0
        %614 = vmatprep.subr.bf16.mxu0 0
        %615 = vmatpush1.bf16.msra.mxu0 0
        %616 = vmatprep.subr.bf16.mxu0 0
        %617 = vmatpush1.bf16.msra.mxu0 0
        %618 = vmatprep.subr.bf16.mxu0 0
        %619 = vmatpush1.bf16.msra.mxu0 %v602
        %620 = vmatprep.subr.bf16.mxu0 0
        %621 = vmatpush2.bf16.msra.mxu0 0
        %622 = vmatprep.subr.bf16.mxu0 0
        %623 = vmatpush2.bf16.msra.mxu0 0
        %624 = vmatprep.subr.bf16.mxu0 0
        %625 = vmatpush2.bf16.msra.mxu0 0
        %626 = vmatprep.subr.bf16.mxu0 0
        %627 = vmatpush2.bf16.msra.mxu0 0
        %628 = vmatprep.subr.bf16.mxu0 0
        %629 = vmatpush2.bf16.msra.mxu0 0
        %630 = vmatprep.subr.bf16.mxu0 0
        %631 = vmatpush2.bf16.msra.mxu0 0
        %632 = vmatprep.subr.bf16.mxu0 0
        %633 = vmatpush2.bf16.msra.mxu0 0
        %634 = vmatprep.subr.bf16.mxu0 0
        %635 = vmatpush2.bf16.msra.mxu0 0
        %636 = vmatprep.mubr.bf16.mxu0 0
        %637 = vmatmul.mubr.bf16.gmra.mxu0 %v599
        %v638 = vpop.f32.mrf.mxu0
        %v639 = vadd.f32 0.0, %v638
        %v640 = vpop.f32.mrf.mxu0
        %v641 = vpop.f32.mrf.mxu0
        %v642 = vadd.f32 0.0, %v641
        %v643 = vpop.f32.mrf.mxu0
        %644 = vdwg.mxu0
        %v645 = vadd.f32 %v571, %v639
        %v646 = vadd.f32 %v572, %v642
        %v647 = vld [vmem:[%s320] sm:$0xe]
        %s648 = scalar_lea.vmem %s3, 10
        %v649 = vld [vmem:[%s648] sm:$0x3]
        %v651 = vunpack.c.l.b16 %v647
        %v652 = vpack.c.b16 %v582, %v651
        %v653 = vrot.slane %v652, 1
        %v654 = vrot.slane %v585, 1
        %v655 = vsel %vm462, %v653, %v654
        %v657 = vsel %vm361, %v655, 0
        %v660 = vsel %vm365, %v649, 0
        %662 = vmatprep.subr.bf16.mxu0 0
        %663 = vmatpush1.bf16.msra.mxu0 0
        %664 = vmatprep.subr.bf16.mxu0 0
        %665 = vmatpush1.bf16.msra.mxu0 0
        %666 = vmatprep.subr.bf16.mxu0 0
        %667 = vmatpush1.bf16.msra.mxu0 0
        %668 = vmatprep.subr.bf16.mxu0 0
        %669 = vmatpush1.bf16.msra.mxu0 0
        %670 = vmatprep.subr.bf16.mxu0 0
        %671 = vmatpush1.bf16.msra.mxu0 0
        %672 = vmatprep.subr.bf16.mxu0 0
        %673 = vmatpush1.bf16.msra.mxu0 0
        %674 = vmatprep.subr.bf16.mxu0 0
        %675 = vmatpush1.bf16.msra.mxu0 0
        %676 = vmatprep.subr.bf16.mxu0 0
        %677 = vmatpush1.bf16.msra.mxu0 %v660
        %678 = vmatprep.subr.bf16.mxu0 0
        %679 = vmatpush2.bf16.msra.mxu0 0
        %680 = vmatprep.subr.bf16.mxu0 0
        %681 = vmatpush2.bf16.msra.mxu0 0
        %682 = vmatprep.subr.bf16.mxu0 0
        %683 = vmatpush2.bf16.msra.mxu0 0
        %684 = vmatprep.subr.bf16.mxu0 0
        %685 = vmatpush2.bf16.msra.mxu0 0
        %686 = vmatprep.subr.bf16.mxu0 0
        %687 = vmatpush2.bf16.msra.mxu0 0
        %688 = vmatprep.subr.bf16.mxu0 0
        %689 = vmatpush2.bf16.msra.mxu0 0
        %690 = vmatprep.subr.bf16.mxu0 0
        %691 = vmatpush2.bf16.msra.mxu0 0
        %692 = vmatprep.subr.bf16.mxu0 0
        %693 = vmatpush2.bf16.msra.mxu0 0
        %694 = vmatprep.mubr.bf16.mxu0 0
        %695 = vmatmul.mubr.bf16.gmra.mxu0 %v657
        %v696 = vpop.f32.mrf.mxu0
        %v697 = vadd.f32 0.0, %v696
        %v698 = vpop.f32.mrf.mxu0
        %v699 = vpop.f32.mrf.mxu0
        %v700 = vadd.f32 0.0, %v699
        %v701 = vpop.f32.mrf.mxu0
        %702 = vdwg.mxu0
        %v703 = vadd.f32 %v645, %v697
        %v704 = vadd.f32 %v646, %v700
        %v705 = vld [vmem:[%s331] sm:$0xf]
        %v706 = vld [vmem:[%s331 + $0x4] sm:$0xf]
        %s707 = scalar_lea.vmem %s3, 12
        %v708 = vld [vmem:[%s707] sm:$0x3]
        %v711 = vunpack.c.l.b16 %v705
        %v712 = vunpack.c.l.b16 %v706
        %v713 = vpack.c.b16 %v712, %v711
        %v715 = vsel %vm361, %v713, 0
        %v718 = vsel %vm365, %v708, 0
        %720 = vmatprep.subr.bf16.mxu0 0
        %721 = vmatpush1.bf16.msra.mxu0 0
        %722 = vmatprep.subr.bf16.mxu0 0
        %723 = vmatpush1.bf16.msra.mxu0 0
        %724 = vmatprep.subr.bf16.mxu0 0
        %725 = vmatpush1.bf16.msra.mxu0 0
        %726 = vmatprep.subr.bf16.mxu0 0
        %727 = vmatpush1.bf16.msra.mxu0 0
        %728 = vmatprep.subr.bf16.mxu0 0
        %729 = vmatpush1.bf16.msra.mxu0 0
        %730 = vmatprep.subr.bf16.mxu0 0
        %731 = vmatpush1.bf16.msra.mxu0 0
        %732 = vmatprep.subr.bf16.mxu0 0
        %733 = vmatpush1.bf16.msra.mxu0 0
        %734 = vmatprep.subr.bf16.mxu0 0
        %735 = vmatpush1.bf16.msra.mxu0 %v718
        %736 = vmatprep.subr.bf16.mxu0 0
        %737 = vmatpush2.bf16.msra.mxu0 0
        %738 = vmatprep.subr.bf16.mxu0 0
        %739 = vmatpush2.bf16.msra.mxu0 0
        %740 = vmatprep.subr.bf16.mxu0 0
        %741 = vmatpush2.bf16.msra.mxu0 0
        %742 = vmatprep.subr.bf16.mxu0 0
        %743 = vmatpush2.bf16.msra.mxu0 0
        %744 = vmatprep.subr.bf16.mxu0 0
        %745 = vmatpush2.bf16.msra.mxu0 0
        %746 = vmatprep.subr.bf16.mxu0 0
        %747 = vmatpush2.bf16.msra.mxu0 0
        %748 = vmatprep.subr.bf16.mxu0 0
        %749 = vmatpush2.bf16.msra.mxu0 0
        %750 = vmatprep.subr.bf16.mxu0 0
        %751 = vmatpush2.bf16.msra.mxu0 0
        %752 = vmatprep.mubr.bf16.mxu0 0
        %753 = vmatmul.mubr.bf16.gmra.mxu0 %v715
        %v754 = vpop.f32.mrf.mxu0
        %v755 = vadd.f32 0.0, %v754
        %v756 = vpop.f32.mrf.mxu0
        %v757 = vpop.f32.mrf.mxu0
        %v758 = vadd.f32 0.0, %v757
        %v759 = vpop.f32.mrf.mxu0
        %760 = vdwg.mxu0
        %v761 = vadd.f32 %v703, %v755
        %v762 = vadd.f32 %v704, %v758
        %v763 = vld [vmem:[%s331] sm:$0xf]
        %v764 = vld [vmem:[%s331 + $0x4] sm:$0xf]
        %v765 = vld [vmem:[%s331 + $0x8] sm:$0x1]
        %s766 = scalar_lea.vmem %s3, 14
        %v767 = vld [vmem:[%s766] sm:$0x3]
        %v771 = vunpack.c.l.b16 %v763
        %v772 = vunpack.c.l.b16 %v764
        %v773 = vunpack.c.l.b16 %v765
        %v774 = vpack.c.b16 %v772, %v771
        %v775 = vpack.c.b16 %v773, %v773
        %v777 = vshrl.u32 %v774, 16
        %v779 = vshll.u32 %v774, 16
        %v781 = vrot.slane %v779, 1
        %v782 = vor.u32 %v777, %v781
        %v784 = vshll.u32 %v775, 16
        %v786 = vrot.slane %v784, 1
        %v787 = vsel %vm348, %v782, %v786
        %v789 = vsel %vm361, %v787, 0
        %v792 = vsel %vm365, %v767, 0
        %794 = vmatprep.subr.bf16.mxu0 0
        %795 = vmatpush1.bf16.msra.mxu0 0
        %796 = vmatprep.subr.bf16.mxu0 0
        %797 = vmatpush1.bf16.msra.mxu0 0
        %798 = vmatprep.subr.bf16.mxu0 0
        %799 = vmatpush1.bf16.msra.mxu0 0
        %800 = vmatprep.subr.bf16.mxu0 0
        %801 = vmatpush1.bf16.msra.mxu0 0
        %802 = vmatprep.subr.bf16.mxu0 0
        %803 = vmatpush1.bf16.msra.mxu0 0
        %804 = vmatprep.subr.bf16.mxu0 0
        %805 = vmatpush1.bf16.msra.mxu0 0
        %806 = vmatprep.subr.bf16.mxu0 0
        %807 = vmatpush1.bf16.msra.mxu0 0
        %808 = vmatprep.subr.bf16.mxu0 0
        %809 = vmatpush1.bf16.msra.mxu0 %v792
        %810 = vmatprep.subr.bf16.mxu0 0
        %811 = vmatpush2.bf16.msra.mxu0 0
        %812 = vmatprep.subr.bf16.mxu0 0
        %813 = vmatpush2.bf16.msra.mxu0 0
        %814 = vmatprep.subr.bf16.mxu0 0
        %815 = vmatpush2.bf16.msra.mxu0 0
        %816 = vmatprep.subr.bf16.mxu0 0
        %817 = vmatpush2.bf16.msra.mxu0 0
        %818 = vmatprep.subr.bf16.mxu0 0
        %819 = vmatpush2.bf16.msra.mxu0 0
        %820 = vmatprep.subr.bf16.mxu0 0
        %821 = vmatpush2.bf16.msra.mxu0 0
        %822 = vmatprep.subr.bf16.mxu0 0
        %823 = vmatpush2.bf16.msra.mxu0 0
        %824 = vmatprep.subr.bf16.mxu0 0
        %825 = vmatpush2.bf16.msra.mxu0 0
        %826 = vmatprep.mubr.bf16.mxu0 0
        %827 = vmatmul.mubr.bf16.gmra.mxu0 %v789
        %v828 = vpop.f32.mrf.mxu0
        %v829 = vadd.f32 0.0, %v828
        %v830 = vpop.f32.mrf.mxu0
        %v831 = vpop.f32.mrf.mxu0
        %v832 = vadd.f32 0.0, %v831
        %v833 = vpop.f32.mrf.mxu0
        %834 = vdwg.mxu0
        %v835 = vadd.f32 %v761, %v829
        %v836 = vadd.f32 %v762, %v832
        %v837 = vld [vmem:[%s331] sm:$0xe]
        %s838 = scalar_lea.vmem %s3, 16
        %v839 = vld [vmem:[%s838] sm:$0x3]
        %v841 = vunpack.c.l.b16 %v837
        %v842 = vpack.c.b16 %v772, %v841
        %v843 = vrot.slane %v842, 1
        %v844 = vrot.slane %v775, 1
        %v845 = vsel %vm462, %v843, %v844
        %v847 = vsel %vm361, %v845, 0
        %v850 = vsel %vm365, %v839, 0
        %852 = vmatprep.subr.bf16.mxu0 0
        %853 = vmatpush1.bf16.msra.mxu0 0
        %854 = vmatprep.subr.bf16.mxu0 0
        %855 = vmatpush1.bf16.msra.mxu0 0
        %856 = vmatprep.subr.bf16.mxu0 0
        %857 = vmatpush1.bf16.msra.mxu0 0
        %858 = vmatprep.subr.bf16.mxu0 0
        %859 = vmatpush1.bf16.msra.mxu0 0
        %860 = vmatprep.subr.bf16.mxu0 0
        %861 = vmatpush1.bf16.msra.mxu0 0
        %862 = vmatprep.subr.bf16.mxu0 0
        %863 = vmatpush1.bf16.msra.mxu0 0
        %864 = vmatprep.subr.bf16.mxu0 0
        %865 = vmatpush1.bf16.msra.mxu0 0
        %866 = vmatprep.subr.bf16.mxu0 0
        %867 = vmatpush1.bf16.msra.mxu0 %v850
        %868 = vmatprep.subr.bf16.mxu0 0
        %869 = vmatpush2.bf16.msra.mxu0 0
        %870 = vmatprep.subr.bf16.mxu0 0
        %871 = vmatpush2.bf16.msra.mxu0 0
        %872 = vmatprep.subr.bf16.mxu0 0
        %873 = vmatpush2.bf16.msra.mxu0 0
        %874 = vmatprep.subr.bf16.mxu0 0
        %875 = vmatpush2.bf16.msra.mxu0 0
        %876 = vmatprep.subr.bf16.mxu0 0
        %877 = vmatpush2.bf16.msra.mxu0 0
        %878 = vmatprep.subr.bf16.mxu0 0
        %879 = vmatpush2.bf16.msra.mxu0 0
        %880 = vmatprep.subr.bf16.mxu0 0
        %881 = vmatpush2.bf16.msra.mxu0 0
        %882 = vmatprep.subr.bf16.mxu0 0
        %883 = vmatpush2.bf16.msra.mxu0 0
        %884 = vmatprep.mubr.bf16.mxu0 0
        %885 = vmatmul.mubr.bf16.gmra.mxu0 %v847
        %v886 = vpop.f32.mrf.mxu0
        %v887 = vadd.f32 0.0, %v886
        %v888 = vpop.f32.mrf.mxu0
        %v889 = vpop.f32.mrf.mxu0
        %v890 = vadd.f32 0.0, %v889
        %v891 = vpop.f32.mrf.mxu0
        %892 = vdwg.mxu0
        %v893 = vadd.f32 %v835, %v887
        %v894 = vadd.f32 %v836, %v890
        %v895 = vld [vmem:[%s4] sm:$0x1]
        %v897 = vlaneseq
        %v898 = vshrl.u32 %v897, 7
        %v899 = vsub.s32 0, %v898
        %v900 = vrot.slane %v895, %v899
        %v902 = vadd.f32 %v893, %v900
        %v903 = vadd.f32 %v894, %v900
        %v904 = vpack.c.bf16 %v903, %v902
        %v906 = vunpack.c.l.b16 %v904
        %v907 = vunpack.c.h.b16 %v904
        %v908 = vpack.c.b16 %v906, %v906
        %v909 = vpack.c.b16 %v907, %v907
        %912 = vst [vmem:[%s301] sm:$0xf] %v908
        %913 = vst [vmem:[%s301 + $0x4] sm:$0xf] %v909
        %s914 = sand.u32 %s171, 1
        %s915 = scalar_lea.sflag [#allocation3], %s914
        %s916 = sand.u32 %s171, 1
        %s917 = smul.addr %s916, 8
        %s918 = scalar_lea.vmem [#allocation2], %s917
        // Predicated region
        $region41: #{tpu_custom_call.1} parent=39 // pred_check
          %p919 = pneg %p181
        $region42: #{tpu_custom_call.1} parent=39 // pred_check_branch
          %921 = sbr.rel (%p919) target = $region44
        $region43: #{tpu_custom_call.1} parent=39 // pred_region
          %s923 = ssub.s32 128, 128
          %924 = vsyncadd %s915, %s923
          %s925 = smul.addr %s24, 2
          %s926 = smul.addr %s23, 32
          %s927 = sadd.s32 %s925, %s926
          %s928 = smul.addr %s927, 64
          %s929 = scalar_lea.hbm %s5, %s928
          %s930 = sshll.u32 %s918, 4
          %s931 = int_to_ptr.vmem [resolvable:$true] %s930
          %936 = dma.vmem_to_hbm [thread:$0]  %s931, 128, %s929, %s915, 64, 64, 4
        $region44: #{tpu_custom_call.1} parent=39 // pred_fallthru
          _
      $region40: #{tpu_custom_call.1} parent=5 // pred_fallthru
        _
      %p937 = scmp.le.s32.totalorder 2, %s14
      // Predicated region
      $region45: #{tpu_custom_call.1} parent=5 // pred_check
        %p938 = pneg %p937
      $region46: #{tpu_custom_call.1} parent=5 // pred_check_branch
        %940 = sbr.rel (%p938) target = $region48
      $region47: #{tpu_custom_call.1} parent=5 // pred_region
        %s941 = ssub.s32 %s14, 2
        // Predicated region
        $region49: #{tpu_custom_call.1} parent=47 // pred_check
          %p942 = pneg %p187
        $region50: #{tpu_custom_call.1} parent=47 // pred_check_branch
          %944 = sbr.rel (%p942) target = $region52
        $region51: #{tpu_custom_call.1} parent=47 // pred_region
          %s945 = sand.u32 %s172, 1
          %s946 = scalar_lea.sflag [#allocation3], %s945
          %s947 = sand.u32 %s172, 1
          %s948 = smul.addr %s947, 8
          %s949 = scalar_lea.vmem [#allocation2], %s948
          %950 = dma.done %s946, 128
        $region52: #{tpu_custom_call.1} parent=47 // pred_fallthru
          _
      $region48: #{tpu_custom_call.1} parent=5 // pred_fallthru
        _
    $region6: #{tpu_custom_call.1} parent=1 // loop_footer
      %s18 = sadd.s32 1, %s14
    $region7: #{tpu_custom_call.1} parent=1 // loop_footer_branch
      %13 = sbr.rel target = $region3
    $region8: #{tpu_custom_call.1} parent=1 // loop_exit
      _
    %951 = vsyncpa [#allocation3], 1
    %s952 = scalar_lea.sflag [#allocation3], 1
    %953 = vsyncpa %s952, 1

</llo_original>
